<compile_context>
chip_gen: v7x
topology: tpu7x:2x2x1
jax: 0.10.0
libtpu: 0.0.40
codegen_flags: <defaults>
</compile_context>

<pallas_src>
from functools import partial

import jax
import jax.numpy as jnp
from jax import lax
from jax.experimental import pallas as pl
from jax.experimental.pallas import tpu as pltpu

_LANE = 128


# ---------------------------------------------------------------------------
# Kernels
# ---------------------------------------------------------------------------

def _cam_fused_kernel(gamma_ref, x_ref, o_ref, *, tc_inner, approx, mxu_dtype):
    """Fused path: one grid step per (batch, C-row slab).

    x block (C, Np) resident across the slab axis; this step computes the
    slab's energy rows, gamma-folded softmax, apply matmul and residual.
    """
    gamma = gamma_ref[0]                       # hoist scalar read off the hot path
    C, _ = x_ref.shape
    tc = o_ref.shape[0]
    s = pl.program_id(1)

    x_full = x_ref[...]                                        # (C, Np), input dtype
    rhs = x_full if mxu_dtype is None else x_full.astype(mxu_dtype)
    if tc == C:                                # single slab: no dynamic slicing
        x_res = x_full
        lhs = rhs
    else:
        row0 = pl.multiple_of(s * tc, tc)
        x_res = x_ref[pl.ds(row0, tc), :]                      # (tc, Np)
        lhs = x_res if mxu_dtype is None else x_res.astype(mxu_dtype)

    # energy[c, d] = sum_n x[c, n] * x[d, n] — contract last dims, no transpose.
    energy = lax.dot_general(
        lhs, rhs, dimension_numbers=(((1,), (1,)), ((), ())),
        preferred_element_type=jnp.float32)                    # (tc, C) f32

    # Unrolled sub-slab loop: softmax of sub-slab j+1 (EUP/XLU) can co-issue
    # with the MXU apply of sub-slab j.
    ti = tc_inner
    for j in range(tc // ti):
        e = energy[j * ti:(j + 1) * ti]                        # (ti, C), static slice
        m = jnp.max(e, axis=-1, keepdims=True)
        p = jnp.exp(e - m)
        inv = pl.reciprocal(jnp.sum(p, axis=-1, keepdims=True), approx=approx)
        # gamma folded into the softmax scale: result = (gamma*softmax) @ x + x.
        attn = (p * (inv * gamma)).astype(rhs.dtype)
        out = jnp.dot(attn, rhs, preferred_element_type=jnp.float32)   # (ti, Np)
        o_ref[j * ti:(j + 1) * ti, :] = (
            out + x_res[j * ti:(j + 1) * ti]).astype(o_ref.dtype)


def _cam_energy_kernel(gamma_ref, x_ref, attn_ref, acc_ref, *, approx, mxu_dtype):
    """Tiled pass 1: accumulate a (tc, C) Gram slab over N tiles; gamma-folded
    softmax on the last tile."""
    s = pl.program_id(1)
    n = pl.program_id(2)
    C = x_ref.shape[0]
    tc = attn_ref.shape[0]

    @pl.when(n == 0)
    def _():
        acc_ref[...] = jnp.zeros_like(acc_ref)

    x = x_ref[...]                                             # (C, tn)
    rhs = x if mxu_dtype is None else x.astype(mxu_dtype)
    if tc == C:
        lhs = rhs
    else:
        row0 = pl.multiple_of(s * tc, tc)
        lhs = x_ref[pl.ds(row0, tc), :]                        # slab rows, same block
        if mxu_dtype is not None:
            lhs = lhs.astype(mxu_dtype)

    acc_ref[...] += lax.dot_general(
        lhs, rhs, dimension_numbers=(((1,), (1,)), ((), ())),
        preferred_element_type=jnp.float32)                    # (tc, C)

    @pl.when(n == pl.num_programs(2) - 1)
    def _():
        gamma = gamma_ref[0]
        energy = acc_ref[...]
        m = jnp.max(energy, axis=-1, keepdims=True)
        p = jnp.exp(energy - m)
        inv = pl.reciprocal(jnp.sum(p, axis=-1, keepdims=True), approx=approx)
        attn_ref[...] = (p * (inv * gamma)).astype(attn_ref.dtype)


def _cam_apply_kernel(attn_ref, x_ref, o_ref, *, mxu_dtype):
    """Tiled pass 2: o_tile = (gamma-scaled attention) @ x_tile + x_tile."""
    attn = attn_ref[...]                                       # (C, C), resident
    x = x_ref[...]                                             # (C, tn)
    rhs = x if mxu_dtype is None else x.astype(mxu_dtype)
    out = jnp.dot(attn, rhs, preferred_element_type=jnp.float32)
    o_ref[...] = (out + x).astype(o_ref.dtype)


# ---------------------------------------------------------------------------
# Heuristics
# ---------------------------------------------------------------------------

def _vmem_capacity_bytes():
    try:
        cap = int(getattr(pltpu.get_tpu_info(), "vmem_capacity_bytes", 0))
    except Exception:
        cap = 0
    return cap if cap > 0 else 64 * 1024 * 1024        # v7x per-TC: safe floor


def _guess_num_tensorcores():
    """Best-effort TensorCores-per-device (2 on megacore/v7x-class, else 1)."""
    try:
        kind = jax.devices()[0].device_kind.lower()
    except Exception:
        return 1
    return 2 if any(t in kind for t in ("v4", "v5p", "v7", "7x")) else 1


def _pick_fused_slabs(C, c_slab=None):
    """(grid slab rows, in-kernel sub-slab rows) for the fused path."""
    if c_slab is not None:
        tc = int(c_slab)
        assert C % tc == 0 and (tc == C or tc % 8 == 0), (C, tc)
    elif C % 256 == 0 and C > 256:
        tc = 256        # second 'parallel' axis (v7x) + bounded f32 temporaries
    else:
        tc = C
    # Sub-slab for softmax/apply overlap.  TODO(synk): 128 also matches v5e's
    # 128-wide MXU; a per-generation choice (256 on v6e/v7x) needs a chip query.
    ti = 128 if (tc % 128 == 0 and tc > 128) else tc
    return tc, ti


def _pick_pass1_slab(C, num_tc, c_slab=None):
    """Gram-slab rows for tiled pass 1 (parallel axis only on multi-TC parts,
    since each extra slab re-reads the x tile)."""
    if c_slab is not None:
        tc = int(c_slab)
        assert C % tc == 0 and (tc == C or tc % 8 == 0), (C, tc)
        return tc
    if num_tc > 1 and C % num_tc == 0:
        tc = C // num_tc
        if tc % 8 == 0 and tc >= 128:
            return tc
    return C


def _fused_vmem_bytes(C, tc, ti, Np, itemsize):
    x_blk = C * Np * itemsize          # resident x block (double-buffered)
    out_blk = tc * Np * itemsize       # output slab block (double-buffered)
    f32_tmps = 3 * ti * Np * 4         # apply result + epilogue temps (per sub-slab)
    softmax = 4 * tc * C * 4           # energy + exp + reductions (f32)
    return 2 * x_blk + 2 * out_blk + f32_tmps + softmax


def _pick_tile_n(N, target=2048):
    """Spatial tile width: multiple of 128 capped at `target`.  N is padded UP
    to a multiple of the tile (exact for this op), so tn never collapses to 128
    just because Np/128 has no convenient divisor."""
    n128 = pl.cdiv(N, _LANE) * _LANE
    return min(n128, max(target // _LANE, 1) * _LANE)


def _flatten_pad(x, Np):
    B, C, H, W = x.shape
    N = H * W
    xf = x.reshape(B, C, N)
    if Np != N:
        xf = jnp.pad(xf, ((0, 0), (0, 0), (0, Np - N)))
    return xf


# ---------------------------------------------------------------------------
# Wrapper
# ---------------------------------------------------------------------------

def cam_module_forward(x, gamma, *, block_n=None, c_slab=None, mxu_dtype=None,
                       approx_reciprocal=None):
    """CAM_Module.forward.  x: (B, C, H, W), gamma: scalar/(1,) -> (B, C, H, W).

    block_n:  force the N-streaming two-pass path with this spatial tile width.
    c_slab:   override the C-row slab height (second 'parallel' grid axis).
    mxu_dtype: optional lower-precision dtype (e.g. jnp.bfloat16) used only to
               feed the MXU; accumulation stays f32, residual uses original x.
    """
    B, C, H, W = x.shape
    N = H * W
    gamma = jnp.asarray(gamma).reshape((1,))
    itemsize = jnp.dtype(x.dtype).itemsize
    if approx_reciprocal is None:
        # EUP approx reciprocal is below bf16 cast noise; exact divide for f32
        # keeps results within ~1e-6 of the reference.
        approx_reciprocal = itemsize < 4

    vmem_budget = (_vmem_capacity_bytes() * 3) // 4            # pipeline headroom
    num_tc = _guess_num_tensorcores()

    tc_f, ti_f = _pick_fused_slabs(C, c_slab)
    Np128 = pl.cdiv(N, _LANE) * _LANE
    use_fused = (block_n is None and
                 _fused_vmem_bytes(C, tc_f, ti_f, Np128, itemsize) <= vmem_budget)

    if use_fused:
        Np = Np128
        x_flat = _flatten_pad(x, Np)
        # No input_output_aliases: without guaranteed donation of x, XLA would
        # insert a defensive full copy that erases the single-HBM-read win.
        out_flat = pl.pallas_call(
            partial(_cam_fused_kernel, tc_inner=ti_f, approx=approx_reciprocal,
                    mxu_dtype=mxu_dtype),
            out_shape=jax.ShapeDtypeStruct((B, C, Np), x.dtype),
            grid_spec=pltpu.PrefetchScalarGridSpec(
                num_scalar_prefetch=0,
                grid=(B, C // tc_f),
                in_specs=[
                    pl.BlockSpec(memory_space=pltpu.MemorySpace.SMEM),      # gamma
                    pl.BlockSpec((None, C, Np), lambda b, s: (b, 0, 0)),    # x (resident over s)
                ],
                out_specs=pl.BlockSpec((None, tc_f, Np), lambda b, s: (b, s, 0)),
            ),
            compiler_params=pltpu.CompilerParams(
                dimension_semantics=("parallel", "parallel"),
                vmem_limit_bytes=vmem_budget),
        )(gamma, x_flat)
    else:
        tn = (_pick_tile_n(N) if block_n is None
              else pl.cdiv(int(block_n), _LANE) * _LANE)
        Np = pl.cdiv(N, tn) * tn            # pad UP to a multiple of tn (exact)
        n_tiles = Np // tn
        x_flat = _flatten_pad(x, Np)

        tc1 = _pick_pass1_slab(C, num_tc, c_slab)
        attn_dtype = x.dtype if mxu_dtype is None else mxu_dtype

        # Pass 1: Gram-slab accumulation + gamma-folded softmax on the last tile.
        attn = pl.pallas_call(
            partial(_cam_energy_kernel, approx=approx_reciprocal,
                    mxu_dtype=mxu_dtype),
            out_shape=jax.ShapeDtypeStruct((B, C, C), attn_dtype),
            grid_spec=pltpu.PrefetchScalarGridSpec(
                num_scalar_prefetch=0,
                grid=(B, C // tc1, n_tiles),
                in_specs=[
                    pl.BlockSpec(memory_space=pltpu.MemorySpace.SMEM),          # gamma
                    pl.BlockSpec((None, C, tn), lambda b, s, n: (b, 0, n)),     # x
                ],
                out_specs=pl.BlockSpec((None, tc1, C), lambda b, s, n: (b, s, 0)),
                scratch_shapes=[pltpu.VMEM((tc1, C), jnp.float32)],
            ),
            compiler_params=pltpu.CompilerParams(
                dimension_semantics=("parallel", "parallel", "arbitrary"),
                vmem_limit_bytes=vmem_budget),
        )(gamma, x_flat)

        # Pass 2: out = attn @ x_tile + x_tile (attn already gamma-scaled).
        # TODO(synk): fuse pass 1+2 into one pallas_call via pltpu.emit_pipeline
        # to skip the (B, C, C) HBM round trip (modest win, mainly v7x).
        out_flat = pl.pallas_call(
            partial(_cam_apply_kernel, mxu_dtype=mxu_dtype),
            out_shape=jax.ShapeDtypeStruct((B, C, Np), x.dtype),
            grid_spec=pltpu.PrefetchScalarGridSpec(
                num_scalar_prefetch=0,
                grid=(B, n_tiles),
                in_specs=[
                    pl.BlockSpec((None, C, C), lambda b, n: (b, 0, 0)),     # attn (resident)
                    pl.BlockSpec((None, C, tn), lambda b, n: (b, 0, n)),    # x
                ],
                out_specs=pl.BlockSpec((None, C, tn), lambda b, n: (b, 0, n)),
            ),
            compiler_params=pltpu.CompilerParams(
                dimension_semantics=("parallel", "parallel"),
                vmem_limit_bytes=vmem_budget),
        )(attn, x_flat)

    if Np != N:
        out_flat = out_flat[:, :, :N]
    return out_flat.reshape(B, C, H, W)


# ---------------------------------------------------------------------------
# Pure-JAX reference (matches the PyTorch module exactly)
# ---------------------------------------------------------------------------

def cam_module_reference(x, gamma):
    B, C, H, W = x.shape
    xf = x.reshape(B, C, -1)
    energy = jnp.einsum("bcn,bdn->bcd", xf, xf)
    attn = jax.nn.softmax(energy, axis=-1)
    out = jnp.einsum("bcd,bdn->bcn", attn, xf).reshape(B, C, H, W)
    return jnp.asarray(gamma).reshape(-1)[0] * out + x


if __name__ == "__main__":
    key = jax.random.PRNGKey(0)
    k1, k2 = jax.random.split(key)

    # Small shapes consistent with the module's forward.
    x4 = jax.random.normal(k1, (2, 4, 16, 16), dtype=jnp.float32)
    # Slightly larger channel count so the C-row-slab code paths are exercised.
    x16 = jax.random.normal(k2, (2, 16, 16, 16), dtype=jnp.float32)

    for g in (0.0, 0.5):   # gamma is initialized to zero; also test nonzero
        gamma = jnp.full((1,), g, dtype=jnp.float32)

        ref = cam_module_reference(x4, gamma)
        out_fused = jax.block_until_ready(cam_module_forward(x4, gamma))
        assert out_fused.shape == x4.shape
        assert jnp.allclose(out_fused, ref, atol=1e-4, rtol=1e-4), \
            f"fused mismatch (gamma={g})"

        out_tiled = jax.block_until_ready(
            cam_module_forward(x4, gamma, block_n=128))
        assert jnp.allclose(out_tiled, ref, atol=1e-4, rtol=1e-4), \
            f"tiled mismatch (gamma={g})"

        # Forced C-row slabs: fused grid-slab axis + tiled pass-1 slab axis.
        ref16 = cam_module_reference(x16, gamma)
        out_f16 = jax.block_until_ready(
            cam_module_forward(x16, gamma, c_slab=8))
        assert jnp.allclose(out_f16, ref16, atol=1e-4, rtol=1e-4), \
            f"fused slab mismatch (gamma={g})"

        out_t16 = jax.block_until_ready(
            cam_module_forward(x16, gamma, block_n=128, c_slab=8))
        assert jnp.allclose(out_t16, ref16, atol=1e-4, rtol=1e-4), \
            f"tiled slab mismatch (gamma={g})"

    print("KERNEL_OK")
</pallas_src>

<mosaic_0001>
module attributes {stable_mosaic.version = 11 : i64} {
  func.func @_cam_fused_kernel(%arg0: i32, %arg1: i32, %arg2: memref<1xf32, #tpu.memory_space<smem>>, %arg3: memref<1x4x256xf32, #tpu.memory_space<vmem>>, %arg4: memref<1x4x256xf32, #tpu.memory_space<vmem>>) attributes {dimension_semantics = [#tpu.dimension_semantics<parallel>, #tpu.dimension_semantics<parallel>], iteration_bounds = array<i64: 2, 1>, scalar_prefetch = 0 : i64, scratch_operands = 0 : i64, tpu.core_type = #tpu.core_type<tc>, window_params = [{transform_indices = @transform_0, window_bounds = array<i64: 1>}, {transform_indices = @transform_1, window_bounds = array<i64: 1, 4, 256>}, {transform_indices = @transform_2, window_bounds = array<i64: 1, 4, 256>}]} {
    %c0 = arith.constant 0 : index
    %0 = memref.load %arg2[%c0] : memref<1xf32, #tpu.memory_space<smem>>
    %c0_0 = arith.constant 0 : index
    %c0_1 = arith.constant 0 : index
    %c0_2 = arith.constant 0 : index
    %1 = vector.load %arg3[%c0_0, %c0_1, %c0_2] : memref<1x4x256xf32, #tpu.memory_space<vmem>>, vector<1x4x256xf32>
    %2 = vector.shape_cast %1 : vector<1x4x256xf32> to vector<4x256xf32>
    %cst = arith.constant dense<0.000000e+00> : vector<4x4xf32>
    %3 = tpu.matmul %2, %2, %cst {dimension_numbers = #tpu.dot_dimension_numbers<[1], [1], [0], [0], [0, 0, 1, 0], [], []>} : vector<4x256xf32>, vector<4x256xf32>, vector<4x4xf32> -> vector<4x4xf32>
    %cst_3 = arith.constant dense<0xFF800000> : vector<4xf32>
    %4 = vector.multi_reduction <maximumf>, %3, %cst_3 [1] : vector<4x4xf32> to vector<4xf32>
    %5 = vector.shape_cast %4 : vector<4xf32> to vector<4x1xf32>
    %6 = vector.broadcast %5 : vector<4x1xf32> to vector<4x4xf32>
    %7 = arith.subf %3, %6 : vector<4x4xf32>
    %8 = math.exp %7 : vector<4x4xf32>
    %cst_4 = arith.constant dense<0.000000e+00> : vector<4xf32>
    %9 = vector.multi_reduction <add>, %8, %cst_4 [1] : vector<4x4xf32> to vector<4xf32>
    %10 = vector.shape_cast %9 : vector<4xf32> to vector<4x1xf32>
    %11 = tpu.reciprocal %10 : vector<4x1xf32> -> vector<4x1xf32>
    %12 = vector.broadcast %0 : f32 to vector<4x1xf32>
    %13 = arith.mulf %11, %12 : vector<4x1xf32>
    %14 = vector.broadcast %13 : vector<4x1xf32> to vector<4x4xf32>
    %15 = arith.mulf %8, %14 : vector<4x4xf32>
    %cst_5 = arith.constant dense<0.000000e+00> : vector<4x256xf32>
    %16 = tpu.matmul %15, %2, %cst_5 {dimension_numbers = #tpu.dot_dimension_numbers<[1], [0], [0], [1], [0, 0, 1, 1], [], []>} : vector<4x4xf32>, vector<4x256xf32>, vector<4x256xf32> -> vector<4x256xf32>
    %17 = arith.addf %16, %2 : vector<4x256xf32>
    %c0_6 = arith.constant 0 : index
    %c0_7 = arith.constant 0 : index
    %c0_8 = arith.constant 0 : index
    %18 = vector.load %arg4[%c0_6, %c0_7, %c0_8] : memref<1x4x256xf32, #tpu.memory_space<vmem>>, vector<1x4x256xf32>
    %19 = vector.shape_cast %18 : vector<1x4x256xf32> to vector<4x256xf32>
    %20 = vector.shape_cast %17 : vector<4x256xf32> to vector<1x4x256xf32>
    tpu.vector_store %arg4[%c0_6, %c0_7, %c0_8], %20 {strides = array<i32>} : memref<1x4x256xf32, #tpu.memory_space<vmem>>, vector<1x4x256xf32>,
    return
  }
  func.func @transform_0(%arg0: i32, %arg1: i32) -> i32 {
    %c0_i32 = arith.constant 0 : i32
    %c0_i32_0 = arith.constant 0 : i32
    return %c0_i32 : i32
  }
  func.func @transform_1(%arg0: i32, %arg1: i32) -> (i32, i32, i32) {
    %c0_i32 = arith.constant 0 : i32
    %c0_i32_0 = arith.constant 0 : i32
    %c0_i32_1 = arith.constant 0 : i32
    return %arg0, %c0_i32, %c0_i32_0 : i32, i32, i32
  }
  func.func @transform_2(%arg0: i32, %arg1: i32) -> (i32, i32, i32) {
    %c0_i32 = arith.constant 0 : i32
    %c0_i32_0 = arith.constant 0 : i32
    return %arg0, %arg1, %c0_i32 : i32, i32, i32
  }
}

</mosaic_0001>

<llo_original>
// kernel: tpu_custom_call.1
$region0: #{tpu_custom_call.1}
  #allocation0 [shape = 'u32[]', space=smem, size = 0x4, offset = 0x4, fixed_abs, tag = 'smem constant byte address 0x4 - core index']
  #allocation1 [shape = 'u32[144,128]{1,0:T(1,128)}', space=vmem, size = 0x12000, scoped, tag = 'internal scratch']
  #allocation2 [shape = 'f32[1]{0:T(128)S(6)}', space=smem, size = 0x200, scoped, tag = 'scoped memory for tpu_custom_call.1']
  %s0 = inlined_call_operand.<no memory space> [shape: f32[1], index: 0, kind: input, shape index: {}]
  %s1 = inlined_call_operand.hbm [shape: f32[2,4,256], index: 1, kind: input, shape index: {}]
  %s2 = inlined_call_operand.hbm [shape: f32[2,4,256], index: 2, kind: output, shape index: {}]
  %s3 = sld [smem:[#allocation0]]
  $region45: #{tpu_custom_call.1} parent=0
    _
  %s5 = ssub.s32 1, %s3
  %s6 = scalar_select 0, %s5, %s3
  %7 = sst [smem:[#allocation2]] %s0
  $region1: #{tpu_custom_call.1} parent=0
    #allocation3 [shape = 'u8[8192]{0}', space=vmem, size = 0x2000, scoped, tag = 'input window, operand 1']
    #allocation4 [shape = 's32[2]{0}', space=sflag, size = 0x8, scoped, tag = 'scoped memory for tpu_custom_call.1']
    #allocation5 [shape = 's32[2]{0}', space=sflag, size = 0x8, scoped, tag = 'scoped memory for tpu_custom_call.1']
    #allocation6 [shape = 'u8[8192]{0}', space=vmem, size = 0x2000, scoped, tag = 'output window, operand 0']
    %8 = vsyncpa [#allocation4], 0
    %s9 = scalar_lea.sflag [#allocation4], 1
    %10 = vsyncpa %s9, 0
    %11 = vsyncpa [#allocation5], 0
    %s12 = scalar_lea.sflag [#allocation5], 1
    %13 = vsyncpa %s12, 0
    loop: start=0, step=1, limit=4
    $region2: #{tpu_custom_call.1} parent=1 // loop_pre_header
      _
    $region3: #{tpu_custom_call.1} parent=1 // loop_header
      %s15 = sphi 0, %s19
      %p16 = scmp.ge.s32.totalorder %s15, 4
      %s22 = sphi 0, %s34
      %s23 = sphi 0, %s30
      %s24 = sphi 0, %s22
      %s25 = sphi 0, %s23
      %s26 = sphi 0, %s24
      %s27 = sphi 0, %s25
      %s35 = sphi 0, %s35
      %s37 = sphi 0, %s35
      %s38 = sphi 0, %s37
      %s52 = sphi 0, %s38
      %s58 = sphi 0, %s60
      %s61 = sphi 0, %s58
      %s62 = sphi 0, %s61
      %s78 = sphi 0, %s62
      %s86 = sphi 0, %s88
      %s89 = sphi 0, %s86
      %s90 = sphi 0, %s89
      %s106 = sphi 0, %s90
    $region4: #{tpu_custom_call.1} parent=1 // loop_header_branch
      %18 = sbr.rel (%p16) target = $region8
    $region5: #{tpu_custom_call.1} parent=1 // loop_body
      %s20 = ssub.s32 %s15, 1
      %s21 = ssub.s32 %s15, 2
      %s28 = sadd.s32 1, %s23
      %p29 = scmp.ge.s32.totalorder %s28, 1
      %s30 = scalar_select %p29, 0, %s28
      %s31 = sadd.s32 1, %s22
      %s32 = scalar_select %p29, %s31, %s22
      %p33 = scmp.ge.s32.totalorder %s32, 2
      %s34 = scalar_select %p33, 0, %s32
      %s36 = sadd.s32 %s35, 1
      %p39 = scmp.eq.s32.totalorder %s15, 1
      %p40 = scmp.ne.s32.totalorder %s35, %s37
      %p41 = scmp.eq.s32.totalorder %s15, 0
      %p42 = por %p40, %p41
      %p43 = scmp.ne.s32.totalorder %s35, %s37
      %p44 = scmp.eq.s32.totalorder %s20, 1
      %p45 = por %p43, %p44
      %p46 = scmp.ne.s32.totalorder %s37, %s38
      %p47 = scmp.eq.s32.totalorder %s20, 0
      %p48 = por %p46, %p47
      %p49 = scmp.ne.s32.totalorder %s37, %s38
      %p50 = scmp.eq.s32.totalorder %s21, 1
      %p51 = por %p49, %p50
      %p53 = scmp.ne.s32.totalorder %s38, %s52
      %p54 = scmp.eq.s32.totalorder %s21, 0
      %p55 = por %p53, %p54
      %s56 = ssub.s32 %s22, %s34
      %p57 = scmp.eq.s32.totalorder %s56, 0
      %s59 = sadd.s32 %s58, 1
      %s60 = scalar_select %p57, %s58, %s59
      %p63 = pneg %p57
      %p64 = scmp.eq.s32.totalorder %s15, 1
      %p65 = por %p63, %p64
      %p66 = scmp.ne.s32.totalorder %s58, %s61
      %p67 = scmp.eq.s32.totalorder %s15, 0
      %p68 = por %p66, %p67
      %p69 = scmp.ne.s32.totalorder %s58, %s61
      %p70 = scmp.eq.s32.totalorder %s20, 1
      %p71 = por %p69, %p70
      %p72 = scmp.ne.s32.totalorder %s61, %s62
      %p73 = scmp.eq.s32.totalorder %s20, 0
      %p74 = por %p72, %p73
      %p75 = scmp.ne.s32.totalorder %s61, %s62
      %p76 = scmp.eq.s32.totalorder %s21, 1
      %p77 = por %p75, %p76
      %p79 = scmp.ne.s32.totalorder %s62, %s78
      %p80 = scmp.eq.s32.totalorder %s21, 0
      %p81 = por %p79, %p80
      %s82 = ssub.s32 %s22, %s34
      %s83 = ssub.s32 %s23, %s30
      %s84 = sor.u32 %s82, %s83
      %p85 = scmp.eq.s32.totalorder %s84, 0
      %s87 = sadd.s32 %s86, 1
      %s88 = scalar_select %p85, %s86, %s87
      %p91 = pneg %p85
      %p92 = scmp.eq.s32.totalorder %s15, 1
      %p93 = por %p91, %p92
      %p94 = scmp.ne.s32.totalorder %s86, %s89
      %p95 = scmp.eq.s32.totalorder %s15, 0
      %p96 = por %p94, %p95
      %p97 = scmp.ne.s32.totalorder %s86, %s89
      %p98 = scmp.eq.s32.totalorder %s20, 1
      %p99 = por %p97, %p98
      %p100 = scmp.ne.s32.totalorder %s89, %s90
      %p101 = scmp.eq.s32.totalorder %s20, 0
      %p102 = por %p100, %p101
      %p103 = scmp.ne.s32.totalorder %s89, %s90
      %p104 = scmp.eq.s32.totalorder %s21, 1
      %p105 = por %p103, %p104
      %p107 = scmp.ne.s32.totalorder %s90, %s106
      %p108 = scmp.eq.s32.totalorder %s21, 0
      %p109 = por %p107, %p108
      %p110 = scmp.le.s32.totalorder 1, %s15
      %p111 = scmp.lt.s32.totalorder %s15, 3
      %p112 = pnand %p110, %p111
      %p113 = pneg %p112
      // Predicated region
      $region9: #{tpu_custom_call.1} parent=5 // pred_check
        _
      $region10: #{tpu_custom_call.1} parent=5 // pred_check_branch
        %115 = sbr.rel (%p112) target = $region12
      $region11: #{tpu_custom_call.1} parent=5 // pred_region
        %s116 = ssub.s32 %s15, 1
        // Predicated region
        $region13: #{tpu_custom_call.1} parent=11 // pred_check
          %p117 = pneg %p48
        $region14: #{tpu_custom_call.1} parent=11 // pred_check_branch
          %119 = sbr.rel (%p117) target = $region16
        $region15: #{tpu_custom_call.1} parent=11 // pred_region
          _
        $region16: #{tpu_custom_call.1} parent=11 // pred_fallthru
          _
      $region12: #{tpu_custom_call.1} parent=5 // pred_fallthru
        _
      %p120 = scmp.lt.s32.totalorder %s15, 2
      // Predicated region
      $region17: #{tpu_custom_call.1} parent=5 // pred_check
        %p121 = pneg %p120
      $region18: #{tpu_custom_call.1} parent=5 // pred_check_branch
        %123 = sbr.rel (%p121) target = $region20
      $region19: #{tpu_custom_call.1} parent=5 // pred_region
        // Predicated region
        $region21: #{tpu_custom_call.1} parent=19 // pred_check
          %p124 = pneg %p68
        $region22: #{tpu_custom_call.1} parent=19 // pred_check_branch
          %126 = sbr.rel (%p124) target = $region24
        $region23: #{tpu_custom_call.1} parent=19 // pred_region
          %s127 = sand.u32 %s58, 1
          %s128 = scalar_lea.sflag [#allocation4], %s127
          %s129 = sand.u32 %s58, 1
          %s130 = smul.addr %s129, 8
          %s131 = scalar_lea.vmem [#allocation3], %s130
          %s133 = ssub.s32 128, 128
          %134 = vsyncadd %s128, %s133
          %s135 = smul.addr %s22, 2
          %s136 = smul.addr %s135, 64
          %s137 = scalar_lea.hbm %s1, %s136
          %s139 = sshll.u32 %s131, 4
          %s140 = int_to_ptr.vmem [resolvable:$true] %s139
          %142 = dma.hbm_to_vmem [thread:$0]  %s137, 128, %s140, %s128
        $region24: #{tpu_custom_call.1} parent=19 // pred_fallthru
          _
      $region20: #{tpu_custom_call.1} parent=5 // pred_fallthru
        _
      %p143 = scmp.le.s32.totalorder 1, %s15
      %p144 = scmp.lt.s32.totalorder %s15, 3
      %p145 = pnand %p143, %p144
      %p146 = pneg %p145
      // Predicated region
      $region25: #{tpu_custom_call.1} parent=5 // pred_check
        _
      $region26: #{tpu_custom_call.1} parent=5 // pred_check_branch
        %148 = sbr.rel (%p145) target = $region28
      $region27: #{tpu_custom_call.1} parent=5 // pred_region
        %s149 = ssub.s32 %s15, 1
        %s150 = sand.u32 %s61, 1
        %s151 = scalar_lea.sflag [#allocation4], %s150
        %s152 = sand.u32 %s61, 1
        %s153 = smul.addr %s152, 8
        %s154 = scalar_lea.vmem [#allocation3], %s153
        // Predicated region
        $region29: #{tpu_custom_call.1} parent=27 // pred_check
          %p155 = pneg %p74
        $region30: #{tpu_custom_call.1} parent=27 // pred_check_branch
          %157 = sbr.rel (%p155) target = $region32
        $region31: #{tpu_custom_call.1} parent=27 // pred_region
          %158 = dma.done %s151, 128
        $region32: #{tpu_custom_call.1} parent=27 // pred_fallthru
          _
        %p159 = pneg %p48
        %p160 = pneg %p45
        %s161 = sand.u32 %s61, 1
        %s162 = scalar_lea.sflag [#allocation4], %s161
        %s163 = sand.u32 %s61, 1
        %s164 = smul.addr %s163, 8
        %s165 = scalar_lea.vmem [#allocation3], %s164
        %p166 = pneg %p74
        %p167 = pneg %p71
        %p168 = pneg %p102
        %p169 = pneg %p99
        %s170 = sand.u32 %s89, 1
        %s171 = scalar_lea.sflag [#allocation5], %s170
        %s172 = sand.u32 %s89, 1
        %s173 = smul.addr %s172, 8
        %s174 = scalar_lea.vmem [#allocation6], %s173
        %s175 = sld [smem:[#allocation2]]
        %v176 = vld [vmem:[%s154] sm:$0xff]
        %v178 = vcombine.high %v176, %v176
        %180 = vmatprep.subr.mxu0 %v178
        %181 = vmatpush1.xpose.msra.mxu0 %v176
        %182 = vmatprep.subr.mxu0 0.0
        %183 = vmatpush1.xpose.msra.mxu0 0.0
        %184 = vmatprep.subr.mxu0 0.0
        %185 = vmatpush1.xpose.msra.mxu0 0.0
        %186 = vmatprep.subr.mxu0 0.0
        %187 = vmatpush1.xpose.msra.mxu0 0.0
        %188 = vmatprep.subr.mxu0 0.0
        %189 = vmatpush1.xpose.msra.mxu0 0.0
        %190 = vmatprep.subr.mxu0 0.0
        %191 = vmatpush1.xpose.msra.mxu0 0.0
        %192 = vmatprep.subr.mxu0 0.0
        %193 = vmatpush1.xpose.msra.mxu0 0.0
        %194 = vmatprep.subr.mxu0 0.0
        %195 = vmatpush1.xpose.msra.mxu0 0.0
        %196 = vmatprep.subr.mxu0 0.0
        %197 = vmatpush1.xpose.msra.mxu0 0.0
        %198 = vmatprep.subr.mxu0 0.0
        %199 = vmatpush1.xpose.msra.mxu0 0.0
        %200 = vmatprep.subr.mxu0 0.0
        %201 = vmatpush1.xpose.msra.mxu0 0.0
        %202 = vmatprep.subr.mxu0 0.0
        %203 = vmatpush1.xpose.msra.mxu0 0.0
        %204 = vmatprep.subr.mxu0 0.0
        %205 = vmatpush1.xpose.msra.mxu0 0.0
        %206 = vmatprep.subr.mxu0 0.0
        %207 = vmatpush1.xpose.msra.mxu0 0.0
        %208 = vmatprep.subr.mxu0 0.0
        %209 = vmatpush1.xpose.msra.mxu0 0.0
        %210 = vmatprep.subr.mxu0 0.0
        %211 = vmatpush1.xpose.msra.mxu0 0.0
        %212 = vmatprep.subr.mxu0 0.0
        %213 = vmatpush1.xpose.msra.mxu0 0.0
        %214 = vmatprep.subr.mxu0 0.0
        %215 = vmatpush1.xpose.msra.mxu0 0.0
        %216 = vmatprep.subr.mxu0 0.0
        %217 = vmatpush1.xpose.msra.mxu0 0.0
        %218 = vmatprep.subr.mxu0 0.0
        %219 = vmatpush1.xpose.msra.mxu0 0.0
        %220 = vmatprep.subr.mxu0 0.0
        %221 = vmatpush1.xpose.msra.mxu0 0.0
        %222 = vmatprep.subr.mxu0 0.0
        %223 = vmatpush1.xpose.msra.mxu0 0.0
        %224 = vmatprep.subr.mxu0 0.0
        %225 = vmatpush1.xpose.msra.mxu0 0.0
        %226 = vmatprep.subr.mxu0 0.0
        %227 = vmatpush1.xpose.msra.mxu0 0.0
        %228 = vmatprep.subr.mxu0 0.0
        %229 = vmatpush1.xpose.msra.mxu0 0.0
        %230 = vmatprep.subr.mxu0 0.0
        %231 = vmatpush1.xpose.msra.mxu0 0.0
        %232 = vmatprep.subr.mxu0 0.0
        %233 = vmatpush1.xpose.msra.mxu0 0.0
        %234 = vmatprep.subr.mxu0 0.0
        %235 = vmatpush1.xpose.msra.mxu0 0.0
        %236 = vmatprep.subr.mxu0 0.0
        %237 = vmatpush1.xpose.msra.mxu0 0.0
        %238 = vmatprep.subr.mxu0 0.0
        %239 = vmatpush1.xpose.msra.mxu0 0.0
        %240 = vmatprep.subr.mxu0 0.0
        %241 = vmatpush1.xpose.msra.mxu0 0.0
        %242 = vmatprep.subr.mxu0 0.0
        %243 = vmatpush1.xpose.msra.mxu0 0.0
        %244 = vmatprep.mubr.f32.mxu0 %v178
        %245 = vmatmul.mubr.f32.gmra.mrb[0].mxu0 %v176
        %v246 = vpop.f32.mrb[0].mxu0
        %v247 = vadd.f32 0.0, %v246
        %v248 = vpop.f32.mrb[0].mxu0
        %249 = vdwg.mxu0
        %vm250 = vcmask 27648
        %v251 = vsel %vm250, %v247, -inf
        %252 = vmax.xlane.f32.xlu0 %v251
        %v253 = vpop.xlane.xlu0 %252
        %v254 = vsub.f32 %v247, %v253
        %v255 = vmul.f32 %v254, 1.442695
        %v256 = vpow.pop %v255
        %v257 = vsel %vm250, %v256, 0.0
        %258 = vadd.xlane.f32.xlu0 %v257
        %v259 = vpop.xlane.xlu0 %258
        %v260 = vrcp.pop %v259
        %v261 = vstv %s175
        %v262 = vmul.f32 %v260, %v261
        %v263 = vmul.f32 %v256, %v262
        %vm264 = vcmask 31744
        %v266 = vsel %vm264, %v263, 0
        %vm268 = vcmask 1043456
        %v269 = vsel %vm268, %v176, 0
        %v271 = vsel %vm268, %v178, 0
        %273 = vmatprep.subr.mxu0 %v271
        %274 = vmatpush1.msra.mxu0 %v269
        %275 = vmatprep.subr.mxu0 0.0
        %276 = vmatpush1.msra.mxu0 0.0
        %277 = vmatprep.subr.mxu0 0.0
        %278 = vmatpush1.msra.mxu0 0.0
        %279 = vmatprep.subr.mxu0 0.0
        %280 = vmatpush1.msra.mxu0 0.0
        %281 = vmatprep.subr.mxu0 0.0
        %282 = vmatpush1.msra.mxu0 0.0
        %283 = vmatprep.subr.mxu0 0.0
        %284 = vmatpush1.msra.mxu0 0.0
        %285 = vmatprep.subr.mxu0 0.0
        %286 = vmatpush1.msra.mxu0 0.0
        %287 = vmatprep.subr.mxu0 0.0
        %288 = vmatpush1.msra.mxu0 0.0
        %289 = vmatprep.subr.mxu0 0.0
        %290 = vmatpush1.msra.mxu0 0.0
        %291 = vmatprep.subr.mxu0 0.0
        %292 = vmatpush1.msra.mxu0 0.0
        %293 = vmatprep.subr.mxu0 0.0
        %294 = vmatpush1.msra.mxu0 0.0
        %295 = vmatprep.subr.mxu0 0.0
        %296 = vmatpush1.msra.mxu0 0.0
        %297 = vmatprep.subr.mxu0 0.0
        %298 = vmatpush1.msra.mxu0 0.0
        %299 = vmatprep.subr.mxu0 0.0
        %300 = vmatpush1.msra.mxu0 0.0
        %301 = vmatprep.subr.mxu0 0.0
        %302 = vmatpush1.msra.mxu0 0.0
        %303 = vmatprep.subr.mxu0 0.0
        %304 = vmatpush1.msra.mxu0 0.0
        %305 = vmatprep.subr.mxu0 0.0
        %306 = vmatpush1.msra.mxu0 0.0
        %307 = vmatprep.subr.mxu0 0.0
        %308 = vmatpush1.msra.mxu0 0.0
        %309 = vmatprep.subr.mxu0 0.0
        %310 = vmatpush1.msra.mxu0 0.0
        %311 = vmatprep.subr.mxu0 0.0
        %312 = vmatpush1.msra.mxu0 0.0
        %313 = vmatprep.subr.mxu0 0.0
        %314 = vmatpush1.msra.mxu0 0.0
        %315 = vmatprep.subr.mxu0 0.0
        %316 = vmatpush1.msra.mxu0 0.0
        %317 = vmatprep.subr.mxu0 0.0
        %318 = vmatpush1.msra.mxu0 0.0
        %319 = vmatprep.subr.mxu0 0.0
        %320 = vmatpush1.msra.mxu0 0.0
        %321 = vmatprep.subr.mxu0 0.0
        %322 = vmatpush1.msra.mxu0 0.0
        %323 = vmatprep.subr.mxu0 0.0
        %324 = vmatpush1.msra.mxu0 0.0
        %325 = vmatprep.subr.mxu0 0.0
        %326 = vmatpush1.msra.mxu0 0.0
        %327 = vmatprep.subr.mxu0 0.0
        %328 = vmatpush1.msra.mxu0 0.0
        %329 = vmatprep.subr.mxu0 0.0
        %330 = vmatpush1.msra.mxu0 0.0
        %331 = vmatprep.subr.mxu0 0.0
        %332 = vmatpush1.msra.mxu0 0.0
        %333 = vmatprep.subr.mxu0 0.0
        %334 = vmatpush1.msra.mxu0 0.0
        %335 = vmatprep.subr.mxu0 0.0
        %336 = vmatpush1.msra.mxu0 0.0
        %337 = vmatprep.mubr.f32.mxu0 0.0
        %338 = vmatmul.mubr.f32.gmra.mrb[0].mxu0 %v266
        %v339 = vpop.f32.mrb[0].mxu0
        %v340 = vadd.f32 %v176, %v339
        %v341 = vpop.f32.mrb[0].mxu0
        %v342 = vadd.f32 %v178, %v341
        %343 = vdwg.mxu0
        %v346 = vcombine.low %v340, %v342
        %348 = vst [vmem:[%s174] sm:$0xff] %v346
        %s349 = sand.u32 %s89, 1
        %s350 = scalar_lea.sflag [#allocation5], %s349
        %s351 = sand.u32 %s89, 1
        %s352 = smul.addr %s351, 8
        %s353 = scalar_lea.vmem [#allocation6], %s352
        // Predicated region
        $region33: #{tpu_custom_call.1} parent=27 // pred_check
          %p354 = pneg %p99
        $region34: #{tpu_custom_call.1} parent=27 // pred_check_branch
          %356 = sbr.rel (%p354) target = $region36
        $region35: #{tpu_custom_call.1} parent=27 // pred_region
          %s358 = ssub.s32 128, 128
          %359 = vsyncadd %s350, %s358
          %s360 = smul.addr %s25, 2
          %s361 = smul.addr %s24, 2
          %s362 = sadd.s32 %s360, %s361
          %s363 = smul.addr %s362, 64
          %s364 = scalar_lea.hbm %s2, %s363
          %s366 = sshll.u32 %s353, 4
          %s367 = int_to_ptr.vmem [resolvable:$true] %s366
          %369 = dma.vmem_to_hbm [thread:$0]  %s367, 128, %s364, %s350
        $region36: #{tpu_custom_call.1} parent=27 // pred_fallthru
          _
      $region28: #{tpu_custom_call.1} parent=5 // pred_fallthru
        _
      %p370 = scmp.le.s32.totalorder 2, %s15
      // Predicated region
      $region37: #{tpu_custom_call.1} parent=5 // pred_check
        %p371 = pneg %p370
      $region38: #{tpu_custom_call.1} parent=5 // pred_check_branch
        %373 = sbr.rel (%p371) target = $region40
      $region39: #{tpu_custom_call.1} parent=5 // pred_region
        %s374 = ssub.s32 %s15, 2
        // Predicated region
        $region41: #{tpu_custom_call.1} parent=39 // pred_check
          %p375 = pneg %p105
        $region42: #{tpu_custom_call.1} parent=39 // pred_check_branch
          %377 = sbr.rel (%p375) target = $region44
        $region43: #{tpu_custom_call.1} parent=39 // pred_region
          %s378 = sand.u32 %s90, 1
          %s379 = scalar_lea.sflag [#allocation5], %s378
          %s380 = sand.u32 %s90, 1
          %s381 = smul.addr %s380, 8
          %s382 = scalar_lea.vmem [#allocation6], %s381
          %383 = dma.done %s379, 128
        $region44: #{tpu_custom_call.1} parent=39 // pred_fallthru
          _
      $region40: #{tpu_custom_call.1} parent=5 // pred_fallthru
        _
    $region6: #{tpu_custom_call.1} parent=1 // loop_footer
      %s19 = sadd.s32 1, %s15
    $region7: #{tpu_custom_call.1} parent=1 // loop_footer_branch
      %14 = sbr.rel target = $region3
    $region8: #{tpu_custom_call.1} parent=1 // loop_exit
      _
    %384 = vsyncpa [#allocation4], 1
    %s385 = scalar_lea.sflag [#allocation4], 1
    %386 = vsyncpa %s385, 1
    %387 = vsyncpa [#allocation5], 1
    %s388 = scalar_lea.sflag [#allocation5], 1
    %389 = vsyncpa %s388, 1

</llo_original>
